<compile_context>
chip_gen: v7x
topology: tpu7x:2x2x1
jax: 0.10.0
libtpu: 0.0.40
codegen_flags: <defaults>
</compile_context>

<pallas_src>
import functools

import jax
import jax.numpy as jnp
from jax.experimental import pallas as pl
from jax.experimental.pallas import tpu as pltpu


def _round_up(x, m):
    return (x + m - 1) // m * m


# --------------------------------------------------------------------------- kernel
def gru_update_kernel(x_ref, h_ref, wih_ref, whh_ref, brz_ref, bin_ref, bhn_ref, o_ref):
    """Fused single-step GRU cell for one row tile.

    x_ref/h_ref : [tn, D_pad]        messages / previous hidden state
    wih_ref     : [D_pad, 3*D_pad]   W_ih^T (gate order r|z|n), already in MXU dtype
    whh_ref     : [D_pad, 3*D_pad]   W_hh^T
    brz_ref     : [1, 2*D_pad]       b_ih + b_hh for the r|z gates (f32)
    bin_ref     : [1, D_pad]         b_in (f32)
    bhn_ref     : [1, D_pad]         b_hn (f32)
    o_ref       : [tn, D_pad]
    """
    D = o_ref.shape[1]
    mxu_dt = wih_ref.dtype

    x = x_ref[...]
    h = h_ref[...]
    x_m = x if x.dtype == mxu_dt else x.astype(mxu_dt)
    h_m = h if h.dtype == mxu_dt else h.astype(mxu_dt)

    # Two MXU matmuls over the full feature dim, f32 accumulate.
    gi = jnp.dot(x_m, wih_ref[...], preferred_element_type=jnp.float32)
    gh = jnp.dot(h_m, whh_ref[...], preferred_element_type=jnp.float32)

    # r | z with a single EUP sigmoid over the contiguous [tn, 2D] slab.
    rz = jax.nn.sigmoid(gi[:, :2 * D] + gh[:, :2 * D] + brz_ref[...])
    r = rz[:, :D]
    z = rz[:, D:]

    n = jnp.tanh(gi[:, 2 * D:] + bin_ref[...] + r * (gh[:, 2 * D:] + bhn_ref[...]))

    h32 = h.astype(jnp.float32)
    o_ref[...] = (n + z * (h32 - n)).astype(o_ref.dtype)   # == (1-z)*n + z*h


# --------------------------------------------------------------------------- params
def init_gru_params(key, node_dim):
    """PyTorch nn.GRU-style init: U(-1/sqrt(H), 1/sqrt(H)), PyTorch layout [3H, H]."""
    k = 1.0 / float(node_dim) ** 0.5
    kw1, kw2, kb1, kb2 = jax.random.split(key, 4)
    w_ih = jax.random.uniform(kw1, (3 * node_dim, node_dim), jnp.float32, -k, k)
    w_hh = jax.random.uniform(kw2, (3 * node_dim, node_dim), jnp.float32, -k, k)
    b_ih = jax.random.uniform(kb1, (3 * node_dim,), jnp.float32, -k, k)
    b_hh = jax.random.uniform(kb2, (3 * node_dim,), jnp.float32, -k, k)
    return w_ih, w_hh, b_ih, b_hh


def prepare_gru_params(raw_params, *, mxu_dtype=jnp.bfloat16):
    """One-time prep: transpose to [D, 3D], per-gate zero-pad each r|z|n block to a
    128-multiple, cast weights to the MXU dtype (bf16 by default), and fold biases
    (b_rz = b_ih + b_hh for the r|z gates). Biases stay f32."""
    w_ih, w_hh, b_ih, b_hh = raw_params
    D = w_ih.shape[1]
    D_pad = max(_round_up(D, 128), 128)
    pad = D_pad - D

    def pad_w_t(w):  # [3D, D] -> [D_pad, 3*D_pad]
        w_t = w.T
        blocks = [jnp.pad(w_t[:, g * D:(g + 1) * D], ((0, pad), (0, pad)))
                  for g in range(3)]
        return jnp.concatenate(blocks, axis=1).astype(mxu_dtype)

    def pad_b(b):
        return jnp.pad(b.astype(jnp.float32), (0, pad))

    b_sum = b_ih + b_hh
    b_rz = jnp.concatenate([pad_b(b_sum[:D]), pad_b(b_sum[D:2 * D])]).reshape(1, -1)
    b_in = pad_b(b_ih[2 * D:]).reshape(1, -1)
    b_hn = pad_b(b_hh[2 * D:]).reshape(1, -1)
    return (pad_w_t(w_ih), pad_w_t(w_hh), b_rz, b_in, b_hn)


# --------------------------------------------------------------------------- wrapper
@functools.partial(jax.jit, static_argnames=("row_tile",))
def gru_update(messages, node_states, params, *, row_tile=512):
    """Forward pass of GRUUpdate: one fused pallas_call over a row-tiled grid."""
    w_ih_t, w_hh_t, b_rz, b_in, b_hn = params
    N, D = node_states.shape
    assert messages.shape == (N, D)
    D_pad = w_ih_t.shape[0]

    x, h = messages, node_states
    if D_pad != D:
        # TODO(synk): choose node_dim % 128 == 0 (or pad activations at graph-construction
        # time) so these extra HBM passes disappear; weights are already padded at init.
        x = jnp.pad(x, ((0, 0), (0, D_pad - D)))
        h = jnp.pad(h, ((0, 0), (0, D_pad - D)))

    sub = 16 if x.dtype == jnp.bfloat16 else 8       # sublane packing for the row tile
    # Large row tiles amortize per-grid-step overhead and MXU weight re-pushes, but keep
    # at least 2 row tiles so the "parallel" axis shards across v7x's 2 TensorCores.
    tn = min(_round_up(row_tile, sub), _round_up(max(pl.cdiv(N, 2), 1), sub))
    tn = max(tn, sub)
    grid_n = pl.cdiv(N, tn)     # ragged last tile handled in-pipeline (no wrapper pad/slice)

    wbytes = jnp.dtype(w_ih_t.dtype).itemsize
    abytes = jnp.dtype(x.dtype).itemsize
    obytes = jnp.dtype(node_states.dtype).itemsize
    footprint = (2 * D_pad * 3 * D_pad * wbytes      # weights, single-buffered
                 + 4 * D_pad * 4                     # folded biases
                 + 2 * 2 * tn * D_pad * abytes       # x, h double-buffered
                 + 2 * tn * D_pad * obytes           # out double-buffered
                 + 2 * tn * 3 * D_pad * 4)           # gi/gh f32 live intermediates
    vmem_limit = int(min(64 * 2 ** 20, max(32 * 2 ** 20, 2 * footprint)))
    # TODO(synk): for D_pad beyond ~2k the bf16 weights alone exceed v7x's 64 MiB VMEM;
    # add a contraction / gate-column grid axis ("arbitrary", last) with f32 accumulators.

    const = lambda i: (0, 0)
    row = lambda i: (i, 0)
    out = pl.pallas_call(
        gru_update_kernel,
        out_shape=jax.ShapeDtypeStruct((N, D_pad), node_states.dtype),
        grid=(grid_n,),
        in_specs=[
            pl.BlockSpec((tn, D_pad), row),                                              # messages
            pl.BlockSpec((tn, D_pad), row),                                              # node_states
            pl.BlockSpec((D_pad, 3 * D_pad), const, pipeline_mode=pl.Buffered(1)),       # W_ih^T
            pl.BlockSpec((D_pad, 3 * D_pad), const, pipeline_mode=pl.Buffered(1)),       # W_hh^T
            pl.BlockSpec((1, 2 * D_pad), const, pipeline_mode=pl.Buffered(1)),           # b_rz
            pl.BlockSpec((1, D_pad), const, pipeline_mode=pl.Buffered(1)),               # b_in
            pl.BlockSpec((1, D_pad), const, pipeline_mode=pl.Buffered(1)),               # b_hn
        ],
        out_specs=pl.BlockSpec((tn, D_pad), row),
        compiler_params=pltpu.CompilerParams(
            dimension_semantics=("parallel",),          # shards row tiles across v7x's 2 TCs
            vmem_limit_bytes=vmem_limit,
        ),
    )(x, h, w_ih_t, w_hh_t, b_rz, b_in, b_hn)

    if D_pad != D:
        out = out[:, :D]
    return out


# --------------------------------------------------------------------------- reference
def gru_update_ref(messages, node_states, raw_params):
    """Pure-JAX reference (same math as torch.nn.GRU with seq_len=1), full f32 precision."""
    w_ih, w_hh, b_ih, b_hh = raw_params
    D = node_states.shape[1]
    hi = jax.lax.Precision.HIGHEST
    gi = jnp.dot(messages, w_ih.T, precision=hi) + b_ih
    gh = jnp.dot(node_states, w_hh.T, precision=hi) + b_hh
    r = jax.nn.sigmoid(gi[:, :D] + gh[:, :D])
    z = jax.nn.sigmoid(gi[:, D:2 * D] + gh[:, D:2 * D])
    n = jnp.tanh(gi[:, 2 * D:] + r * gh[:, 2 * D:])
    return (1.0 - z) * n + z * node_states


if __name__ == "__main__":
    # Note: nn.GRU's (output, h_n) are identical for seq_len=1; the module only uses output.
    key = jax.random.PRNGKey(0)
    kp, km, kh = jax.random.split(key, 3)

    num_nodes = 64     # batch_size * num_nodes, flattened as in the module
    node_dim = 128     # lane-dense feature width

    raw = init_gru_params(kp, node_dim)
    messages = jax.random.normal(km, (num_nodes, node_dim), jnp.float32)
    node_states = jax.random.normal(kh, (num_nodes, node_dim), jnp.float32)

    ref = gru_update_ref(messages, node_states, raw)

    # Exact-precision path (f32 MXU operands).
    params_f32 = prepare_gru_params(raw, mxu_dtype=jnp.float32)
    out_f32 = jax.block_until_ready(gru_update(messages, node_states, params_f32))
    assert out_f32.shape == (num_nodes, node_dim)
    assert bool(jnp.all(jnp.isfinite(out_f32)))
    err_f32 = float(jnp.max(jnp.abs(out_f32 - ref)))
    assert jnp.allclose(out_f32, ref, atol=1e-2, rtol=1e-2), err_f32

    # Default fast path: bf16 weights in HBM, bf16 MXU operands, f32 accumulate + gate math.
    params_bf16 = prepare_gru_params(raw)
    out_bf16 = jax.block_until_ready(gru_update(messages, node_states, params_bf16))
    assert out_bf16.shape == (num_nodes, node_dim)
    assert bool(jnp.all(jnp.isfinite(out_bf16)))
    err_bf16 = float(jnp.max(jnp.abs(out_bf16 - ref)))
    assert jnp.allclose(out_bf16, ref, atol=3e-2, rtol=3e-2), err_bf16

    print("KERNEL_OK")
</pallas_src>

<mosaic_0001>
module attributes {stable_mosaic.version = 11 : i64} {
  func.func @gru_update_kernel(%arg0: i32, %arg1: memref<32x128xf32, #tpu.memory_space<vmem>>, %arg2: memref<32x128xf32, #tpu.memory_space<vmem>>, %arg3: memref<128x384xf32, #tpu.memory_space<vmem>>, %arg4: memref<128x384xf32, #tpu.memory_space<vmem>>, %arg5: memref<1x256xf32, #tpu.memory_space<vmem>>, %arg6: memref<1x128xf32, #tpu.memory_space<vmem>>, %arg7: memref<1x128xf32, #tpu.memory_space<vmem>>, %arg8: memref<32x128xf32, #tpu.memory_space<vmem>>) attributes {dimension_semantics = [#tpu.dimension_semantics<parallel>], iteration_bounds = array<i64: 2>, scalar_prefetch = 0 : i64, scratch_operands = 0 : i64, tpu.core_type = #tpu.core_type<tc>, window_params = [{transform_indices = @transform_0, window_bounds = array<i64: 32, 128>}, {transform_indices = @transform_1, window_bounds = array<i64: 32, 128>}, {pipeline_mode = #tpu.pipeline_mode<synchronous>, transform_indices = @transform_2, window_bounds = array<i64: 128, 384>}, {pipeline_mode = #tpu.pipeline_mode<synchronous>, transform_indices = @transform_3, window_bounds = array<i64: 128, 384>}, {pipeline_mode = #tpu.pipeline_mode<synchronous>, transform_indices = @transform_4, window_bounds = array<i64: 1, 256>}, {pipeline_mode = #tpu.pipeline_mode<synchronous>, transform_indices = @transform_5, window_bounds = array<i64: 1, 128>}, {pipeline_mode = #tpu.pipeline_mode<synchronous>, transform_indices = @transform_6, window_bounds = array<i64: 1, 128>}, {transform_indices = @transform_7, window_bounds = array<i64: 32, 128>}]} {
    %c0 = arith.constant 0 : index
    %c0_0 = arith.constant 0 : index
    %0 = vector.load %arg1[%c0, %c0_0] : memref<32x128xf32, #tpu.memory_space<vmem>>, vector<32x128xf32>
    %c0_1 = arith.constant 0 : index
    %c0_2 = arith.constant 0 : index
    %1 = vector.load %arg2[%c0_1, %c0_2] : memref<32x128xf32, #tpu.memory_space<vmem>>, vector<32x128xf32>
    %c0_3 = arith.constant 0 : index
    %c0_4 = arith.constant 0 : index
    %2 = vector.load %arg3[%c0_3, %c0_4] : memref<128x384xf32, #tpu.memory_space<vmem>>, vector<128x384xf32>
    %cst = arith.constant dense<0.000000e+00> : vector<32x384xf32>
    %3 = tpu.matmul %0, %2, %cst {dimension_numbers = #tpu.dot_dimension_numbers<[1], [0], [0], [1], [0, 0, 1, 1], [], []>} : vector<32x128xf32>, vector<128x384xf32>, vector<32x384xf32> -> vector<32x384xf32>
    %c0_5 = arith.constant 0 : index
    %c0_6 = arith.constant 0 : index
    %4 = vector.load %arg4[%c0_5, %c0_6] : memref<128x384xf32, #tpu.memory_space<vmem>>, vector<128x384xf32>
    %cst_7 = arith.constant dense<0.000000e+00> : vector<32x384xf32>
    %5 = tpu.matmul %1, %4, %cst_7 {dimension_numbers = #tpu.dot_dimension_numbers<[1], [0], [0], [1], [0, 0, 1, 1], [], []>} : vector<32x128xf32>, vector<128x384xf32>, vector<32x384xf32> -> vector<32x384xf32>
    %6 = vector.extract_strided_slice %3 {offsets = [0, 0], sizes = [32, 256], strides = [1, 1]} : vector<32x384xf32> to vector<32x256xf32>
    %7 = vector.extract_strided_slice %5 {offsets = [0, 0], sizes = [32, 256], strides = [1, 1]} : vector<32x384xf32> to vector<32x256xf32>
    %8 = arith.addf %6, %7 : vector<32x256xf32>
    %c0_8 = arith.constant 0 : index
    %c0_9 = arith.constant 0 : index
    %9 = vector.load %arg5[%c0_8, %c0_9] : memref<1x256xf32, #tpu.memory_space<vmem>>, vector<1x256xf32>
    %10 = vector.broadcast %9 : vector<1x256xf32> to vector<32x256xf32>
    %11 = arith.addf %8, %10 : vector<32x256xf32>
    %12 = arith.negf %11 : vector<32x256xf32>
    %13 = math.exp %12 : vector<32x256xf32>
    %cst_10 = arith.constant 1.000000e+00 : f32
    %14 = vector.broadcast %cst_10 : f32 to vector<32x256xf32>
    %15 = arith.addf %14, %13 : vector<32x256xf32>
    %16 = arith.divf %14, %15 : vector<32x256xf32>
    %17 = vector.extract_strided_slice %16 {offsets = [0, 0], sizes = [32, 128], strides = [1, 1]} : vector<32x256xf32> to vector<32x128xf32>
    %18 = vector.extract_strided_slice %16 {offsets = [0, 128], sizes = [32, 128], strides = [1, 1]} : vector<32x256xf32> to vector<32x128xf32>
    %19 = vector.extract_strided_slice %3 {offsets = [0, 256], sizes = [32, 128], strides = [1, 1]} : vector<32x384xf32> to vector<32x128xf32>
    %c0_11 = arith.constant 0 : index
    %c0_12 = arith.constant 0 : index
    %20 = vector.load %arg6[%c0_11, %c0_12] : memref<1x128xf32, #tpu.memory_space<vmem>>, vector<1x128xf32>
    %21 = vector.broadcast %20 : vector<1x128xf32> to vector<32x128xf32>
    %22 = arith.addf %19, %21 : vector<32x128xf32>
    %23 = vector.extract_strided_slice %5 {offsets = [0, 256], sizes = [32, 128], strides = [1, 1]} : vector<32x384xf32> to vector<32x128xf32>
    %c0_13 = arith.constant 0 : index
    %c0_14 = arith.constant 0 : index
    %24 = vector.load %arg7[%c0_13, %c0_14] : memref<1x128xf32, #tpu.memory_space<vmem>>, vector<1x128xf32>
    %25 = vector.broadcast %24 : vector<1x128xf32> to vector<32x128xf32>
    %26 = arith.addf %23, %25 : vector<32x128xf32>
    %27 = arith.mulf %17, %26 : vector<32x128xf32>
    %28 = arith.addf %22, %27 : vector<32x128xf32>
    %29 = math.tanh %28 : vector<32x128xf32>
    %30 = arith.subf %1, %29 : vector<32x128xf32>
    %31 = arith.mulf %18, %30 : vector<32x128xf32>
    %32 = arith.addf %29, %31 : vector<32x128xf32>
    %c0_15 = arith.constant 0 : index
    %c0_16 = arith.constant 0 : index
    %33 = vector.load %arg8[%c0_15, %c0_16] : memref<32x128xf32, #tpu.memory_space<vmem>>, vector<32x128xf32>
    tpu.vector_store %arg8[%c0_15, %c0_16], %32 {strides = array<i32>} : memref<32x128xf32, #tpu.memory_space<vmem>>, vector<32x128xf32>,
    return
  }
  func.func @transform_0(%arg0: i32) -> (i32, i32) {
    %c0_i32 = arith.constant 0 : i32
    %c0_i32_0 = arith.constant 0 : i32
    return %arg0, %c0_i32 : i32, i32
  }
  func.func @transform_1(%arg0: i32) -> (i32, i32) {
    %c0_i32 = arith.constant 0 : i32
    %c0_i32_0 = arith.constant 0 : i32
    return %arg0, %c0_i32 : i32, i32
  }
  func.func @transform_2(%arg0: i32) -> (i32, i32) {
    %c0_i32 = arith.constant 0 : i32
    %c0_i32_0 = arith.constant 0 : i32
    %c0_i32_1 = arith.constant 0 : i32
    return %c0_i32, %c0_i32_0 : i32, i32
  }
  func.func @transform_3(%arg0: i32) -> (i32, i32) {
    %c0_i32 = arith.constant 0 : i32
    %c0_i32_0 = arith.constant 0 : i32
    %c0_i32_1 = arith.constant 0 : i32
    return %c0_i32, %c0_i32_0 : i32, i32
  }
  func.func @transform_4(%arg0: i32) -> (i32, i32) {
    %c0_i32 = arith.constant 0 : i32
    %c0_i32_0 = arith.constant 0 : i32
    %c0_i32_1 = arith.constant 0 : i32
    return %c0_i32, %c0_i32_0 : i32, i32
  }
  func.func @transform_5(%arg0: i32) -> (i32, i32) {
    %c0_i32 = arith.constant 0 : i32
    %c0_i32_0 = arith.constant 0 : i32
    %c0_i32_1 = arith.constant 0 : i32
    return %c0_i32, %c0_i32_0 : i32, i32
  }
  func.func @transform_6(%arg0: i32) -> (i32, i32) {
    %c0_i32 = arith.constant 0 : i32
    %c0_i32_0 = arith.constant 0 : i32
    %c0_i32_1 = arith.constant 0 : i32
    return %c0_i32, %c0_i32_0 : i32, i32
  }
  func.func @transform_7(%arg0: i32) -> (i32, i32) {
    %c0_i32 = arith.constant 0 : i32
    %c0_i32_0 = arith.constant 0 : i32
    return %arg0, %c0_i32 : i32, i32
  }
}

</mosaic_0001>

<llo_original>
// kernel: gru_update.1
$region0: #{gru_update.1}
  #allocation0 [shape = 'u32[]', space=smem, size = 0x4, offset = 0x4, fixed_abs, tag = 'smem constant byte address 0x4 - core index']
  #allocation1 [shape = 'u32[144,128]{1,0:T(1,128)}', space=vmem, size = 0x12000, scoped, tag = 'internal scratch']
  %s0 = inlined_call_operand.hbm [shape: f32[64,128], index: 0, kind: input, shape index: {}]
  %s1 = inlined_call_operand.hbm [shape: f32[64,128], index: 1, kind: input, shape index: {}]
  %s2 = inlined_call_operand.hbm [shape: f32[128,384], index: 2, kind: input, shape index: {}]
  %s3 = inlined_call_operand.hbm [shape: f32[128,384], index: 3, kind: input, shape index: {}]
  %s4 = inlined_call_operand.vmem [shape: f32[1,256], index: 4, kind: input, shape index: {}]
  %s5 = inlined_call_operand.vmem [shape: f32[1,128], index: 5, kind: input, shape index: {}]
  %s6 = inlined_call_operand.vmem [shape: f32[1,128], index: 6, kind: input, shape index: {}]
  %s7 = inlined_call_operand.hbm [shape: f32[64,128], index: 7, kind: output, shape index: {}]
  %s8 = sld [smem:[#allocation0]]
  $region77: #{gru_update.1} parent=0
    _
  %s10 = ssub.s32 1, %s8
  %s11 = scalar_select 0, %s10, %s8
  $region1: #{gru_update.1} parent=0
    #allocation2 [shape = 'u8[32768]{0}', space=vmem, size = 0x8000, scoped, tag = 'input window, operand 0']
    #allocation3 [shape = 's32[2]{0}', space=sflag, size = 0x8, scoped, tag = 'scoped memory for gru_update.1']
    #allocation4 [shape = 's32[2]{0}', space=sflag, size = 0x8, scoped, tag = 'scoped memory for gru_update.1']
    #allocation5 [shape = 'u8[32768]{0}', space=vmem, size = 0x8000, scoped, tag = 'input window, operand 1']
    #allocation6 [shape = 's32[2]{0}', space=sflag, size = 0x8, scoped, tag = 'scoped memory for gru_update.1']
    #allocation7 [shape = 'u8[196608]{0}', space=vmem, size = 0x30000, scoped, tag = 'input window, operand 2, single buffered']
    #allocation8 [shape = 'u8[196608]{0}', space=vmem, size = 0x30000, scoped, tag = 'input window, operand 3, single buffered']
    #allocation9 [shape = 's32[1]{0}', space=sflag, size = 0x4, scoped, tag = 'scoped memory for gru_update.1']
    #allocation10 [shape = 'u8[32768]{0}', space=vmem, size = 0x8000, scoped, tag = 'output window, operand 0']
    %12 = vsyncpa [#allocation3], 0
    %s13 = scalar_lea.sflag [#allocation3], 1
    %14 = vsyncpa %s13, 0
    %15 = vsyncpa [#allocation6], 0
    %s16 = scalar_lea.sflag [#allocation6], 1
    %17 = vsyncpa %s16, 0
    %18 = vsyncpa [#allocation9], 0
    %19 = vsyncpa [#allocation4], 0
    %s20 = scalar_lea.sflag [#allocation4], 1
    %21 = vsyncpa %s20, 0
    loop: start=0, step=1, limit=4
    $region2: #{gru_update.1} parent=1 // loop_pre_header
      _
    $region3: #{gru_update.1} parent=1 // loop_header
      %s23 = sphi 0, %s27
      %p24 = scmp.ge.s32.totalorder %s23, 4
      %s33 = sphi 0, %s35
      %s36 = sphi 0, %s33
      %s37 = sphi 0, %s36
      %s53 = sphi 0, %s37
      %s59 = sphi 0, %s61
      %s62 = sphi 0, %s59
      %s63 = sphi 0, %s62
      %s79 = sphi 0, %s63
      %s83 = sphi 0, %s83
      %s85 = sphi 0, %s83
      %s86 = sphi 0, %s85
      %s100 = sphi 0, %s86
      %s104 = sphi 0, %s104
      %s106 = sphi 0, %s104
      %s107 = sphi 0, %s106
      %s121 = sphi 0, %s107
      %s125 = sphi 0, %s125
      %s127 = sphi 0, %s125
      %s128 = sphi 0, %s127
      %s142 = sphi 0, %s128
      %s146 = sphi 0, %s146
      %s148 = sphi 0, %s146
      %s149 = sphi 0, %s148
      %s163 = sphi 0, %s149
      %s167 = sphi 0, %s167
      %s169 = sphi 0, %s167
      %s170 = sphi 0, %s169
      %s184 = sphi 0, %s170
      %s190 = sphi 0, %s192
      %s193 = sphi 0, %s190
      %s194 = sphi 0, %s193
      %s210 = sphi 0, %s194
    $region4: #{gru_update.1} parent=1 // loop_header_branch
      %26 = sbr.rel (%p24) target = $region8
    $region5: #{gru_update.1} parent=1 // loop_body
      %s28 = ssub.s32 %s23, 1
      %s29 = ssub.s32 %s23, 2
      %s30 = sadd.s32 %s23, 1
      %s31 = ssub.s32 %s23, %s30
      %p32 = scmp.eq.s32.totalorder %s31, 0
      %s34 = sadd.s32 %s33, 1
      %s35 = scalar_select %p32, %s33, %s34
      %p38 = pneg %p32
      %p39 = scmp.eq.s32.totalorder %s23, 1
      %p40 = por %p38, %p39
      %p41 = scmp.ne.s32.totalorder %s33, %s36
      %p42 = scmp.eq.s32.totalorder %s23, 0
      %p43 = por %p41, %p42
      %p44 = scmp.ne.s32.totalorder %s33, %s36
      %p45 = scmp.eq.s32.totalorder %s28, 1
      %p46 = por %p44, %p45
      %p47 = scmp.ne.s32.totalorder %s36, %s37
      %p48 = scmp.eq.s32.totalorder %s28, 0
      %p49 = por %p47, %p48
      %p50 = scmp.ne.s32.totalorder %s36, %s37
      %p51 = scmp.eq.s32.totalorder %s29, 1
      %p52 = por %p50, %p51
      %p54 = scmp.ne.s32.totalorder %s37, %s53
      %p55 = scmp.eq.s32.totalorder %s29, 0
      %p56 = por %p54, %p55
      %s57 = ssub.s32 %s23, %s30
      %p58 = scmp.eq.s32.totalorder %s57, 0
      %s60 = sadd.s32 %s59, 1
      %s61 = scalar_select %p58, %s59, %s60
      %p64 = pneg %p58
      %p65 = scmp.eq.s32.totalorder %s23, 1
      %p66 = por %p64, %p65
      %p67 = scmp.ne.s32.totalorder %s59, %s62
      %p68 = scmp.eq.s32.totalorder %s23, 0
      %p69 = por %p67, %p68
      %p70 = scmp.ne.s32.totalorder %s59, %s62
      %p71 = scmp.eq.s32.totalorder %s28, 1
      %p72 = por %p70, %p71
      %p73 = scmp.ne.s32.totalorder %s62, %s63
      %p74 = scmp.eq.s32.totalorder %s28, 0
      %p75 = por %p73, %p74
      %p76 = scmp.ne.s32.totalorder %s62, %s63
      %p77 = scmp.eq.s32.totalorder %s29, 1
      %p78 = por %p76, %p77
      %p80 = scmp.ne.s32.totalorder %s63, %s79
      %p81 = scmp.eq.s32.totalorder %s29, 0
      %p82 = por %p80, %p81
      %s84 = sadd.s32 %s83, 1
      %p87 = scmp.eq.s32.totalorder %s23, 1
      %p88 = scmp.ne.s32.totalorder %s83, %s85
      %p89 = scmp.eq.s32.totalorder %s23, 0
      %p90 = por %p88, %p89
      %p91 = scmp.ne.s32.totalorder %s83, %s85
      %p92 = scmp.eq.s32.totalorder %s28, 1
      %p93 = por %p91, %p92
      %p94 = scmp.ne.s32.totalorder %s85, %s86
      %p95 = scmp.eq.s32.totalorder %s28, 0
      %p96 = por %p94, %p95
      %p97 = scmp.ne.s32.totalorder %s85, %s86
      %p98 = scmp.eq.s32.totalorder %s29, 1
      %p99 = por %p97, %p98
      %p101 = scmp.ne.s32.totalorder %s86, %s100
      %p102 = scmp.eq.s32.totalorder %s29, 0
      %p103 = por %p101, %p102
      %s105 = sadd.s32 %s104, 1
      %p108 = scmp.eq.s32.totalorder %s23, 1
      %p109 = scmp.ne.s32.totalorder %s104, %s106
      %p110 = scmp.eq.s32.totalorder %s23, 0
      %p111 = por %p109, %p110
      %p112 = scmp.ne.s32.totalorder %s104, %s106
      %p113 = scmp.eq.s32.totalorder %s28, 1
      %p114 = por %p112, %p113
      %p115 = scmp.ne.s32.totalorder %s106, %s107
      %p116 = scmp.eq.s32.totalorder %s28, 0
      %p117 = por %p115, %p116
      %p118 = scmp.ne.s32.totalorder %s106, %s107
      %p119 = scmp.eq.s32.totalorder %s29, 1
      %p120 = por %p118, %p119
      %p122 = scmp.ne.s32.totalorder %s107, %s121
      %p123 = scmp.eq.s32.totalorder %s29, 0
      %p124 = por %p122, %p123
      %s126 = sadd.s32 %s125, 1
      %p129 = scmp.eq.s32.totalorder %s23, 1
      %p130 = scmp.ne.s32.totalorder %s125, %s127
      %p131 = scmp.eq.s32.totalorder %s23, 0
      %p132 = por %p130, %p131
      %p133 = scmp.ne.s32.totalorder %s125, %s127
      %p134 = scmp.eq.s32.totalorder %s28, 1
      %p135 = por %p133, %p134
      %p136 = scmp.ne.s32.totalorder %s127, %s128
      %p137 = scmp.eq.s32.totalorder %s28, 0
      %p138 = por %p136, %p137
      %p139 = scmp.ne.s32.totalorder %s127, %s128
      %p140 = scmp.eq.s32.totalorder %s29, 1
      %p141 = por %p139, %p140
      %p143 = scmp.ne.s32.totalorder %s128, %s142
      %p144 = scmp.eq.s32.totalorder %s29, 0
      %p145 = por %p143, %p144
      %s147 = sadd.s32 %s146, 1
      %p150 = scmp.eq.s32.totalorder %s23, 1
      %p151 = scmp.ne.s32.totalorder %s146, %s148
      %p152 = scmp.eq.s32.totalorder %s23, 0
      %p153 = por %p151, %p152
      %p154 = scmp.ne.s32.totalorder %s146, %s148
      %p155 = scmp.eq.s32.totalorder %s28, 1
      %p156 = por %p154, %p155
      %p157 = scmp.ne.s32.totalorder %s148, %s149
      %p158 = scmp.eq.s32.totalorder %s28, 0
      %p159 = por %p157, %p158
      %p160 = scmp.ne.s32.totalorder %s148, %s149
      %p161 = scmp.eq.s32.totalorder %s29, 1
      %p162 = por %p160, %p161
      %p164 = scmp.ne.s32.totalorder %s149, %s163
      %p165 = scmp.eq.s32.totalorder %s29, 0
      %p166 = por %p164, %p165
      %s168 = sadd.s32 %s167, 1
      %p171 = scmp.eq.s32.totalorder %s23, 1
      %p172 = scmp.ne.s32.totalorder %s167, %s169
      %p173 = scmp.eq.s32.totalorder %s23, 0
      %p174 = por %p172, %p173
      %p175 = scmp.ne.s32.totalorder %s167, %s169
      %p176 = scmp.eq.s32.totalorder %s28, 1
      %p177 = por %p175, %p176
      %p178 = scmp.ne.s32.totalorder %s169, %s170
      %p179 = scmp.eq.s32.totalorder %s28, 0
      %p180 = por %p178, %p179
      %p181 = scmp.ne.s32.totalorder %s169, %s170
      %p182 = scmp.eq.s32.totalorder %s29, 1
      %p183 = por %p181, %p182
      %p185 = scmp.ne.s32.totalorder %s170, %s184
      %p186 = scmp.eq.s32.totalorder %s29, 0
      %p187 = por %p185, %p186
      %s188 = ssub.s32 %s23, %s30
      %p189 = scmp.eq.s32.totalorder %s188, 0
      %s191 = sadd.s32 %s190, 1
      %s192 = scalar_select %p189, %s190, %s191
      %p195 = pneg %p189
      %p196 = scmp.eq.s32.totalorder %s23, 1
      %p197 = por %p195, %p196
      %p198 = scmp.ne.s32.totalorder %s190, %s193
      %p199 = scmp.eq.s32.totalorder %s23, 0
      %p200 = por %p198, %p199
      %p201 = scmp.ne.s32.totalorder %s190, %s193
      %p202 = scmp.eq.s32.totalorder %s28, 1
      %p203 = por %p201, %p202
      %p204 = scmp.ne.s32.totalorder %s193, %s194
      %p205 = scmp.eq.s32.totalorder %s28, 0
      %p206 = por %p204, %p205
      %p207 = scmp.ne.s32.totalorder %s193, %s194
      %p208 = scmp.eq.s32.totalorder %s29, 1
      %p209 = por %p207, %p208
      %p211 = scmp.ne.s32.totalorder %s194, %s210
      %p212 = scmp.eq.s32.totalorder %s29, 0
      %p213 = por %p211, %p212
      %p214 = scmp.le.s32.totalorder 1, %s23
      %p215 = scmp.lt.s32.totalorder %s23, 3
      %p216 = pnand %p214, %p215
      %p217 = pneg %p216
      // Predicated region
      $region9: #{gru_update.1} parent=5 // pred_check
        _
      $region10: #{gru_update.1} parent=5 // pred_check_branch
        %219 = sbr.rel (%p216) target = $region12
      $region11: #{gru_update.1} parent=5 // pred_region
        %s220 = ssub.s32 %s23, 1
        // Predicated region
        $region13: #{gru_update.1} parent=11 // pred_check
          %p221 = pneg %p96
        $region14: #{gru_update.1} parent=11 // pred_check_branch
          %223 = sbr.rel (%p221) target = $region16
        $region15: #{gru_update.1} parent=11 // pred_region
          %s225 = ssub.s32 6144, 6144
          %226 = vsyncadd [#allocation6], %s225
          %s227 = sshll.u32 [#allocation7], 4
          %s228 = int_to_ptr.vmem [resolvable:$true] %s227
          %233 = dma.hbm_to_vmem [thread:$0]  %s2, 6144, %s228, [#allocation6], 384, 384, 24
        $region16: #{gru_update.1} parent=11 // pred_fallthru
          _
        // Predicated region
        $region17: #{gru_update.1} parent=11 // pred_check
          %p234 = pneg %p117
        $region18: #{gru_update.1} parent=11 // pred_check_branch
          %236 = sbr.rel (%p234) target = $region20
        $region19: #{gru_update.1} parent=11 // pred_region
          %s238 = ssub.s32 6144, 6144
          %239 = vsyncadd [#allocation9], %s238
          %s240 = sshll.u32 [#allocation8], 4
          %s241 = int_to_ptr.vmem [resolvable:$true] %s240
          %246 = dma.hbm_to_vmem [thread:$0]  %s3, 6144, %s241, [#allocation9], 384, 384, 24
        $region20: #{gru_update.1} parent=11 // pred_fallthru
          _
        // Predicated region
        $region21: #{gru_update.1} parent=11 // pred_check
          %p247 = pneg %p138
        $region22: #{gru_update.1} parent=11 // pred_check_branch
          %249 = sbr.rel (%p247) target = $region24
        $region23: #{gru_update.1} parent=11 // pred_region
          _
        $region24: #{gru_update.1} parent=11 // pred_fallthru
          _
        // Predicated region
        $region25: #{gru_update.1} parent=11 // pred_check
          %p250 = pneg %p159
        $region26: #{gru_update.1} parent=11 // pred_check_branch
          %252 = sbr.rel (%p250) target = $region28
        $region27: #{gru_update.1} parent=11 // pred_region
          _
        $region28: #{gru_update.1} parent=11 // pred_fallthru
          _
        // Predicated region
        $region29: #{gru_update.1} parent=11 // pred_check
          %p253 = pneg %p180
        $region30: #{gru_update.1} parent=11 // pred_check_branch
          %255 = sbr.rel (%p253) target = $region32
        $region31: #{gru_update.1} parent=11 // pred_region
          _
        $region32: #{gru_update.1} parent=11 // pred_fallthru
          _
      $region12: #{gru_update.1} parent=5 // pred_fallthru
        _
      %p256 = scmp.lt.s32.totalorder %s23, 2
      // Predicated region
      $region33: #{gru_update.1} parent=5 // pred_check
        %p257 = pneg %p256
      $region34: #{gru_update.1} parent=5 // pred_check_branch
        %259 = sbr.rel (%p257) target = $region36
      $region35: #{gru_update.1} parent=5 // pred_region
        // Predicated region
        $region37: #{gru_update.1} parent=35 // pred_check
          %p260 = pneg %p43
        $region38: #{gru_update.1} parent=35 // pred_check_branch
          %262 = sbr.rel (%p260) target = $region40
        $region39: #{gru_update.1} parent=35 // pred_region
          %s263 = sand.u32 %s33, 1
          %s264 = scalar_lea.sflag [#allocation3], %s263
          %s265 = sand.u32 %s33, 1
          %s266 = smul.addr %s265, 32
          %s267 = scalar_lea.vmem [#allocation2], %s266
          %s268 = smul.u32 4, %s23
          %s270 = ssub.s32 512, 512
          %271 = vsyncadd %s264, %s270
          %s272 = smul.addr %s268, 128
          %s273 = scalar_lea.hbm %s0, %s272
          %s274 = sshll.u32 %s267, 4
          %s275 = int_to_ptr.vmem [resolvable:$true] %s274
          %280 = dma.hbm_to_vmem [thread:$0]  %s273, 512, %s275, %s264, 128, 128, 8
        $region40: #{gru_update.1} parent=35 // pred_fallthru
          _
        // Predicated region
        $region41: #{gru_update.1} parent=35 // pred_check
          %p281 = pneg %p69
        $region42: #{gru_update.1} parent=35 // pred_check_branch
          %283 = sbr.rel (%p281) target = $region44
        $region43: #{gru_update.1} parent=35 // pred_region
          %s284 = sand.u32 %s23, 1
          %s285 = scalar_lea.sflag [#allocation6], %s284
          %s286 = sand.u32 %s59, 1
          %s287 = smul.addr %s286, 32
          %s288 = scalar_lea.vmem [#allocation5], %s287
          %s289 = smul.u32 4, %s23
          %s291 = ssub.s32 512, 512
          %292 = vsyncadd %s285, %s291
          %s293 = smul.addr %s289, 128
          %s294 = scalar_lea.hbm %s1, %s293
          %s295 = sshll.u32 %s288, 4
          %s296 = int_to_ptr.vmem [resolvable:$true] %s295
          %301 = dma.hbm_to_vmem [thread:$0]  %s294, 512, %s296, %s285, 128, 128, 8
        $region44: #{gru_update.1} parent=35 // pred_fallthru
          _
      $region36: #{gru_update.1} parent=5 // pred_fallthru
        _
      %p302 = scmp.le.s32.totalorder 1, %s23
      %p303 = scmp.lt.s32.totalorder %s23, 3
      %p304 = pnand %p302, %p303
      %p305 = pneg %p304
      // Predicated region
      $region45: #{gru_update.1} parent=5 // pred_check
        _
      $region46: #{gru_update.1} parent=5 // pred_check_branch
        %307 = sbr.rel (%p304) target = $region48
      $region47: #{gru_update.1} parent=5 // pred_region
        %s308 = ssub.s32 %s23, 1
        %s309 = sand.u32 %s36, 1
        %s310 = scalar_lea.sflag [#allocation3], %s309
        %s311 = sand.u32 %s36, 1
        %s312 = smul.addr %s311, 32
        %s313 = scalar_lea.vmem [#allocation2], %s312
        // Predicated region
        $region49: #{gru_update.1} parent=47 // pred_check
          %p314 = pneg %p49
        $region50: #{gru_update.1} parent=47 // pred_check_branch
          %316 = sbr.rel (%p314) target = $region52
        $region51: #{gru_update.1} parent=47 // pred_region
          %317 = dma.done %s310, 512
        $region52: #{gru_update.1} parent=47 // pred_fallthru
          _
        %s318 = sand.u32 %s28, 1
        %s319 = scalar_lea.sflag [#allocation6], %s318
        %s320 = sand.u32 %s62, 1
        %s321 = smul.addr %s320, 32
        %s322 = scalar_lea.vmem [#allocation5], %s321
        // Predicated region
        $region53: #{gru_update.1} parent=47 // pred_check
          %p323 = pneg %p75
        $region54: #{gru_update.1} parent=47 // pred_check_branch
          %325 = sbr.rel (%p323) target = $region56
        $region55: #{gru_update.1} parent=47 // pred_region
          %326 = dma.done %s319, 512
        $region56: #{gru_update.1} parent=47 // pred_fallthru
          _
        // Predicated region
        $region57: #{gru_update.1} parent=47 // pred_check
          %p327 = pneg %p96
        $region58: #{gru_update.1} parent=47 // pred_check_branch
          %329 = sbr.rel (%p327) target = $region60
        $region59: #{gru_update.1} parent=47 // pred_region
          %330 = dma.done [#allocation6], 6144
        $region60: #{gru_update.1} parent=47 // pred_fallthru
          _
        // Predicated region
        $region61: #{gru_update.1} parent=47 // pred_check
          %p331 = pneg %p117
        $region62: #{gru_update.1} parent=47 // pred_check_branch
          %333 = sbr.rel (%p331) target = $region64
        $region63: #{gru_update.1} parent=47 // pred_region
          %334 = dma.done [#allocation9], 6144
        $region64: #{gru_update.1} parent=47 // pred_fallthru
          _
        %s335 = sand.u32 %s36, 1
        %s336 = scalar_lea.sflag [#allocation3], %s335
        %s337 = sand.u32 %s36, 1
        %s338 = smul.addr %s337, 32
        %s339 = scalar_lea.vmem [#allocation2], %s338
        %p340 = pneg %p49
        %p341 = pneg %p46
        %s342 = sand.u32 %s28, 1
        %s343 = scalar_lea.sflag [#allocation6], %s342
        %s344 = sand.u32 %s62, 1
        %s345 = smul.addr %s344, 32
        %s346 = scalar_lea.vmem [#allocation5], %s345
        %p347 = pneg %p75
        %p348 = pneg %p72
        %p349 = pneg %p96
        %p350 = pneg %p93
        %p351 = pneg %p117
        %p352 = pneg %p114
        %p353 = pneg %p138
        %p354 = pneg %p135
        %p355 = pneg %p159
        %p356 = pneg %p156
        %p357 = pneg %p180
        %p358 = pneg %p177
        %p359 = pneg %p206
        %p360 = pneg %p203
        %s361 = sand.u32 %s193, 1
        %s362 = scalar_lea.sflag [#allocation4], %s361
        %s363 = sand.u32 %s193, 1
        %s364 = smul.addr %s363, 32
        %s365 = scalar_lea.vmem [#allocation10], %s364
        %s366 = smul.u32 4, %s28
        %s367 = smul.u32 4, %s28
        %s368 = smul.u32 4, %s28
        %v369 = vld [vmem:[%s313] sm:$0xff]
        %v370 = vld [vmem:[%s313 + $0x8] sm:$0xff]
        %v371 = vld [vmem:[%s313 + $0x10] sm:$0xff]
        %v372 = vld [vmem:[%s313 + $0x18] sm:$0xff]
        %v373 = vld [vmem:[%s322] sm:$0xff]
        %v374 = vld [vmem:[%s322 + $0x8] sm:$0xff]
        %v375 = vld [vmem:[%s322 + $0x10] sm:$0xff]
        %v376 = vld [vmem:[%s322 + $0x18] sm:$0xff]
        %v377 = vld [vmem:[#allocation7] sm:$0xff]
        %v378 = vld [vmem:[#allocation7 + $0x8] sm:$0xff]
        %v379 = vld [vmem:[#allocation7 + $0x10] sm:$0xff]
        %v380 = vld [vmem:[#allocation7 + $0x18] sm:$0xff]
        %v381 = vld [vmem:[#allocation7 + $0x20] sm:$0xff]
        %v382 = vld [vmem:[#allocation7 + $0x28] sm:$0xff]
        %v383 = vld [vmem:[#allocation7 + $0x30] sm:$0xff]
        %v384 = vld [vmem:[#allocation7 + $0x38] sm:$0xff]
        %v385 = vld [vmem:[#allocation7 + $0x40] sm:$0xff]
        %v386 = vld [vmem:[#allocation7 + $0x48] sm:$0xff]
        %v387 = vld [vmem:[#allocation7 + $0x50] sm:$0xff]
        %v388 = vld [vmem:[#allocation7 + $0x58] sm:$0xff]
        %v389 = vld [vmem:[#allocation7 + $0x60] sm:$0xff]
        %v390 = vld [vmem:[#allocation7 + $0x68] sm:$0xff]
        %v391 = vld [vmem:[#allocation7 + $0x70] sm:$0xff]
        %v392 = vld [vmem:[#allocation7 + $0x78] sm:$0xff]
        %v393 = vld [vmem:[#allocation7 + $0x80] sm:$0xff]
        %v394 = vld [vmem:[#allocation7 + $0x88] sm:$0xff]
        %v395 = vld [vmem:[#allocation7 + $0x90] sm:$0xff]
        %v396 = vld [vmem:[#allocation7 + $0x98] sm:$0xff]
        %v397 = vld [vmem:[#allocation7 + $0xa0] sm:$0xff]
        %v398 = vld [vmem:[#allocation7 + $0xa8] sm:$0xff]
        %v399 = vld [vmem:[#allocation7 + $0xb0] sm:$0xff]
        %v400 = vld [vmem:[#allocation7 + $0xb8] sm:$0xff]
        %v401 = vld [vmem:[#allocation7 + $0xc0] sm:$0xff]
        %v402 = vld [vmem:[#allocation7 + $0xc8] sm:$0xff]
        %v403 = vld [vmem:[#allocation7 + $0xd0] sm:$0xff]
        %v404 = vld [vmem:[#allocation7 + $0xd8] sm:$0xff]
        %v405 = vld [vmem:[#allocation7 + $0xe0] sm:$0xff]
        %v406 = vld [vmem:[#allocation7 + $0xe8] sm:$0xff]
        %v407 = vld [vmem:[#allocation7 + $0xf0] sm:$0xff]
        %v408 = vld [vmem:[#allocation7 + $0xf8] sm:$0xff]
        %v409 = vld [vmem:[#allocation7 + $0x100] sm:$0xff]
        %v410 = vld [vmem:[#allocation7 + $0x108] sm:$0xff]
        %v411 = vld [vmem:[#allocation7 + $0x110] sm:$0xff]
        %v412 = vld [vmem:[#allocation7 + $0x118] sm:$0xff]
        %v413 = vld [vmem:[#allocation7 + $0x120] sm:$0xff]
        %v414 = vld [vmem:[#allocation7 + $0x128] sm:$0xff]
        %v415 = vld [vmem:[#allocation7 + $0x130] sm:$0xff]
        %v416 = vld [vmem:[#allocation7 + $0x138] sm:$0xff]
        %v417 = vld [vmem:[#allocation7 + $0x140] sm:$0xff]
        %v418 = vld [vmem:[#allocation7 + $0x148] sm:$0xff]
        %v419 = vld [vmem:[#allocation7 + $0x150] sm:$0xff]
        %v420 = vld [vmem:[#allocation7 + $0x158] sm:$0xff]
        %v421 = vld [vmem:[#allocation7 + $0x160] sm:$0xff]
        %v422 = vld [vmem:[#allocation7 + $0x168] sm:$0xff]
        %v423 = vld [vmem:[#allocation7 + $0x170] sm:$0xff]
        %v424 = vld [vmem:[#allocation7 + $0x178] sm:$0xff]
        %425 = vmatprep.subr.mxu0 %v378
        %426 = vmatpush1.msra.mxu0 %v377
        %427 = vmatprep.subr.mxu0 %v381
        %428 = vmatpush1.msra.mxu0 %v380
        %429 = vmatprep.subr.mxu0 %v384
        %430 = vmatpush1.msra.mxu0 %v383
        %431 = vmatprep.subr.mxu0 %v387
        %432 = vmatpush1.msra.mxu0 %v386
        %433 = vmatprep.subr.mxu0 %v390
        %434 = vmatpush1.msra.mxu0 %v389
        %435 = vmatprep.subr.mxu0 %v393
        %436 = vmatpush1.msra.mxu0 %v392
        %437 = vmatprep.subr.mxu0 %v396
        %438 = vmatpush1.msra.mxu0 %v395
        %439 = vmatprep.subr.mxu0 %v399
        %440 = vmatpush1.msra.mxu0 %v398
        %441 = vmatprep.subr.mxu0 %v402
        %442 = vmatpush1.msra.mxu0 %v401
        %443 = vmatprep.subr.mxu0 %v405
        %444 = vmatpush1.msra.mxu0 %v404
        %445 = vmatprep.subr.mxu0 %v408
        %446 = vmatpush1.msra.mxu0 %v407
        %447 = vmatprep.subr.mxu0 %v411
        %448 = vmatpush1.msra.mxu0 %v410
        %449 = vmatprep.subr.mxu0 %v414
        %450 = vmatpush1.msra.mxu0 %v413
        %451 = vmatprep.subr.mxu0 %v417
        %452 = vmatpush1.msra.mxu0 %v416
        %453 = vmatprep.subr.mxu0 %v420
        %454 = vmatpush1.msra.mxu0 %v419
        %455 = vmatprep.subr.mxu0 %v423
        %456 = vmatpush1.msra.mxu0 %v422
        %457 = vmatprep.subr.mxu0 0.0
        %458 = vmatpush1.msra.mxu0 0.0
        %459 = vmatprep.subr.mxu0 0.0
        %460 = vmatpush1.msra.mxu0 0.0
        %461 = vmatprep.subr.mxu0 0.0
        %462 = vmatpush1.msra.mxu0 0.0
        %463 = vmatprep.subr.mxu0 0.0
        %464 = vmatpush1.msra.mxu0 0.0
        %465 = vmatprep.subr.mxu0 0.0
        %466 = vmatpush1.msra.mxu0 0.0
        %467 = vmatprep.subr.mxu0 0.0
        %468 = vmatpush1.msra.mxu0 0.0
        %469 = vmatprep.subr.mxu0 0.0
        %470 = vmatpush1.msra.mxu0 0.0
        %471 = vmatprep.subr.mxu0 0.0
        %472 = vmatpush1.msra.mxu0 0.0
        %473 = vmatprep.subr.mxu0 0.0
        %474 = vmatpush1.msra.mxu0 0.0
        %475 = vmatprep.subr.mxu0 0.0
        %476 = vmatpush1.msra.mxu0 0.0
        %477 = vmatprep.subr.mxu0 0.0
        %478 = vmatpush1.msra.mxu0 0.0
        %479 = vmatprep.subr.mxu0 0.0
        %480 = vmatpush1.msra.mxu0 0.0
        %481 = vmatprep.subr.mxu0 0.0
        %482 = vmatpush1.msra.mxu0 0.0
        %483 = vmatprep.subr.mxu0 0.0
        %484 = vmatpush1.msra.mxu0 0.0
        %485 = vmatprep.subr.mxu0 0.0
        %486 = vmatpush1.msra.mxu0 0.0
        %487 = vmatprep.subr.mxu0 0.0
        %488 = vmatpush1.msra.mxu0 0.0
        %489 = vmatprep.mubr.f32.mxu0 0.0
        %490 = vmatmul.mubr.f32.gmra.mrb[0].mxu0 %v369
        %v491 = vpop.f32.mrb[0].mxu0
        %v492 = vadd.f32 0.0, %v491
        %v493 = vpop.f32.mrb[0].mxu0
        %v494 = vadd.f32 0.0, %v493
        %495 = vmatprep.mubr.f32.mxu0 0.0
        %496 = vmatmul.mubr.f32.gmra.mrb[0].mxu0 %v370
        %v497 = vpop.f32.mrb[0].mxu0
        %v498 = vadd.f32 0.0, %v497
        %v499 = vpop.f32.mrb[0].mxu0
        %v500 = vadd.f32 0.0, %v499
        %501 = vmatprep.mubr.f32.mxu0 0.0
        %502 = vmatmul.mubr.f32.gmra.mrb[0].mxu0 %v371
        %v503 = vpop.f32.mrb[0].mxu0
        %v504 = vadd.f32 0.0, %v503
        %v505 = vpop.f32.mrb[0].mxu0
        %v506 = vadd.f32 0.0, %v505
        %507 = vmatprep.mubr.f32.mxu0 0.0
        %508 = vmatmul.mubr.f32.gmra.mrb[0].mxu0 %v372
        %v509 = vpop.f32.mrb[0].mxu0
        %v510 = vadd.f32 0.0, %v509
        %v511 = vpop.f32.mrb[0].mxu0
        %v512 = vadd.f32 0.0, %v511
        %513 = vdwg.mxu0
        %514 = vmatprep.subr.mxu0 0.0
        %515 = vmatpush1.msra.mxu0 %v379
        %516 = vmatprep.subr.mxu0 0.0
        %517 = vmatpush1.msra.mxu0 %v382
        %518 = vmatprep.subr.mxu0 0.0
        %519 = vmatpush1.msra.mxu0 %v385
        %520 = vmatprep.subr.mxu0 0.0
        %521 = vmatpush1.msra.mxu0 %v388
        %522 = vmatprep.subr.mxu0 0.0
        %523 = vmatpush1.msra.mxu0 %v391
        %524 = vmatprep.subr.mxu0 0.0
        %525 = vmatpush1.msra.mxu0 %v394
        %526 = vmatprep.subr.mxu0 0.0
        %527 = vmatpush1.msra.mxu0 %v397
        %528 = vmatprep.subr.mxu0 0.0
        %529 = vmatpush1.msra.mxu0 %v400
        %530 = vmatprep.subr.mxu0 0.0
        %531 = vmatpush1.msra.mxu0 %v403
        %532 = vmatprep.subr.mxu0 0.0
        %533 = vmatpush1.msra.mxu0 %v406
        %534 = vmatprep.subr.mxu0 0.0
        %535 = vmatpush1.msra.mxu0 %v409
        %536 = vmatprep.subr.mxu0 0.0
        %537 = vmatpush1.msra.mxu0 %v412
        %538 = vmatprep.subr.mxu0 0.0
        %539 = vmatpush1.msra.mxu0 %v415
        %540 = vmatprep.subr.mxu0 0.0
        %541 = vmatpush1.msra.mxu0 %v418
        %542 = vmatprep.subr.mxu0 0.0
        %543 = vmatpush1.msra.mxu0 %v421
        %544 = vmatprep.subr.mxu0 0.0
        %545 = vmatpush1.msra.mxu0 %v424
        %546 = vmatprep.subr.mxu0 0.0
        %547 = vmatpush1.msra.mxu0 0.0
        %548 = vmatprep.subr.mxu0 0.0
        %549 = vmatpush1.msra.mxu0 0.0
        %550 = vmatprep.subr.mxu0 0.0
        %551 = vmatpush1.msra.mxu0 0.0
        %552 = vmatprep.subr.mxu0 0.0
        %553 = vmatpush1.msra.mxu0 0.0
        %554 = vmatprep.subr.mxu0 0.0
        %555 = vmatpush1.msra.mxu0 0.0
        %556 = vmatprep.subr.mxu0 0.0
        %557 = vmatpush1.msra.mxu0 0.0
        %558 = vmatprep.subr.mxu0 0.0
        %559 = vmatpush1.msra.mxu0 0.0
        %560 = vmatprep.subr.mxu0 0.0
        %561 = vmatpush1.msra.mxu0 0.0
        %562 = vmatprep.subr.mxu0 0.0
        %563 = vmatpush1.msra.mxu0 0.0
        %564 = vmatprep.subr.mxu0 0.0
        %565 = vmatpush1.msra.mxu0 0.0
        %566 = vmatprep.subr.mxu0 0.0
        %567 = vmatpush1.msra.mxu0 0.0
        %568 = vmatprep.subr.mxu0 0.0
        %569 = vmatpush1.msra.mxu0 0.0
        %570 = vmatprep.subr.mxu0 0.0
        %571 = vmatpush1.msra.mxu0 0.0
        %572 = vmatprep.subr.mxu0 0.0
        %573 = vmatpush1.msra.mxu0 0.0
        %574 = vmatprep.subr.mxu0 0.0
        %575 = vmatpush1.msra.mxu0 0.0
        %576 = vmatprep.subr.mxu0 0.0
        %577 = vmatpush1.msra.mxu0 0.0
        %578 = vmatprep.mubr.f32.mxu0 0.0
        %579 = vmatmul.mubr.f32.gmra.mrb[0].mxu0 %v369
        %v580 = vpop.f32.mrb[0].mxu0
        %v581 = vadd.f32 0.0, %v580
        %v582 = vpop.f32.mrb[0].mxu0
        %583 = vmatprep.mubr.f32.mxu0 0.0
        %584 = vmatmul.mubr.f32.gmra.mrb[0].mxu0 %v370
        %v585 = vpop.f32.mrb[0].mxu0
        %v586 = vadd.f32 0.0, %v585
        %v587 = vpop.f32.mrb[0].mxu0
        %588 = vmatprep.mubr.f32.mxu0 0.0
        %589 = vmatmul.mubr.f32.gmra.mrb[0].mxu0 %v371
        %v590 = vpop.f32.mrb[0].mxu0
        %v591 = vadd.f32 0.0, %v590
        %v592 = vpop.f32.mrb[0].mxu0
        %593 = vmatprep.mubr.f32.mxu0 0.0
        %594 = vmatmul.mubr.f32.gmra.mrb[0].mxu0 %v372
        %v595 = vpop.f32.mrb[0].mxu0
        %v596 = vadd.f32 0.0, %v595
        %v597 = vpop.f32.mrb[0].mxu0
        %598 = vdwg.mxu0
        %v599 = vld [vmem:[#allocation8] sm:$0xff]
        %v600 = vld [vmem:[#allocation8 + $0x8] sm:$0xff]
        %v601 = vld [vmem:[#allocation8 + $0x10] sm:$0xff]
        %v602 = vld [vmem:[#allocation8 + $0x18] sm:$0xff]
        %v603 = vld [vmem:[#allocation8 + $0x20] sm:$0xff]
        %v604 = vld [vmem:[#allocation8 + $0x28] sm:$0xff]
        %v605 = vld [vmem:[#allocation8 + $0x30] sm:$0xff]
        %v606 = vld [vmem:[#allocation8 + $0x38] sm:$0xff]
        %v607 = vld [vmem:[#allocation8 + $0x40] sm:$0xff]
        %v608 = vld [vmem:[#allocation8 + $0x48] sm:$0xff]
        %v609 = vld [vmem:[#allocation8 + $0x50] sm:$0xff]
        %v610 = vld [vmem:[#allocation8 + $0x58] sm:$0xff]
        %v611 = vld [vmem:[#allocation8 + $0x60] sm:$0xff]
        %v612 = vld [vmem:[#allocation8 + $0x68] sm:$0xff]
        %v613 = vld [vmem:[#allocation8 + $0x70] sm:$0xff]
        %v614 = vld [vmem:[#allocation8 + $0x78] sm:$0xff]
        %v615 = vld [vmem:[#allocation8 + $0x80] sm:$0xff]
        %v616 = vld [vmem:[#allocation8 + $0x88] sm:$0xff]
        %v617 = vld [vmem:[#allocation8 + $0x90] sm:$0xff]
        %v618 = vld [vmem:[#allocation8 + $0x98] sm:$0xff]
        %v619 = vld [vmem:[#allocation8 + $0xa0] sm:$0xff]
        %v620 = vld [vmem:[#allocation8 + $0xa8] sm:$0xff]
        %v621 = vld [vmem:[#allocation8 + $0xb0] sm:$0xff]
        %v622 = vld [vmem:[#allocation8 + $0xb8] sm:$0xff]
        %v623 = vld [vmem:[#allocation8 + $0xc0] sm:$0xff]
        %v624 = vld [vmem:[#allocation8 + $0xc8] sm:$0xff]
        %v625 = vld [vmem:[#allocation8 + $0xd0] sm:$0xff]
        %v626 = vld [vmem:[#allocation8 + $0xd8] sm:$0xff]
        %v627 = vld [vmem:[#allocation8 + $0xe0] sm:$0xff]
        %v628 = vld [vmem:[#allocation8 + $0xe8] sm:$0xff]
        %v629 = vld [vmem:[#allocation8 + $0xf0] sm:$0xff]
        %v630 = vld [vmem:[#allocation8 + $0xf8] sm:$0xff]
        %v631 = vld [vmem:[#allocation8 + $0x100] sm:$0xff]
        %v632 = vld [vmem:[#allocation8 + $0x108] sm:$0xff]
        %v633 = vld [vmem:[#allocation8 + $0x110] sm:$0xff]
        %v634 = vld [vmem:[#allocation8 + $0x118] sm:$0xff]
        %v635 = vld [vmem:[#allocation8 + $0x120] sm:$0xff]
        %v636 = vld [vmem:[#allocation8 + $0x128] sm:$0xff]
        %v637 = vld [vmem:[#allocation8 + $0x130] sm:$0xff]
        %v638 = vld [vmem:[#allocation8 + $0x138] sm:$0xff]
        %v639 = vld [vmem:[#allocation8 + $0x140] sm:$0xff]
        %v640 = vld [vmem:[#allocation8 + $0x148] sm:$0xff]
        %v641 = vld [vmem:[#allocation8 + $0x150] sm:$0xff]
        %v642 = vld [vmem:[#allocation8 + $0x158] sm:$0xff]
        %v643 = vld [vmem:[#allocation8 + $0x160] sm:$0xff]
        %v644 = vld [vmem:[#allocation8 + $0x168] sm:$0xff]
        %v645 = vld [vmem:[#allocation8 + $0x170] sm:$0xff]
        %v646 = vld [vmem:[#allocation8 + $0x178] sm:$0xff]
        %647 = vmatprep.subr.mxu0 %v600
        %648 = vmatpush1.msra.mxu0 %v599
        %649 = vmatprep.subr.mxu0 %v603
        %650 = vmatpush1.msra.mxu0 %v602
        %651 = vmatprep.subr.mxu0 %v606
        %652 = vmatpush1.msra.mxu0 %v605
        %653 = vmatprep.subr.mxu0 %v609
        %654 = vmatpush1.msra.mxu0 %v608
        %655 = vmatprep.subr.mxu0 %v612
        %656 = vmatpush1.msra.mxu0 %v611
        %657 = vmatprep.subr.mxu0 %v615
        %658 = vmatpush1.msra.mxu0 %v614
        %659 = vmatprep.subr.mxu0 %v618
        %660 = vmatpush1.msra.mxu0 %v617
        %661 = vmatprep.subr.mxu0 %v621
        %662 = vmatpush1.msra.mxu0 %v620
        %663 = vmatprep.subr.mxu0 %v624
        %664 = vmatpush1.msra.mxu0 %v623
        %665 = vmatprep.subr.mxu0 %v627
        %666 = vmatpush1.msra.mxu0 %v626
        %667 = vmatprep.subr.mxu0 %v630
        %668 = vmatpush1.msra.mxu0 %v629
        %669 = vmatprep.subr.mxu0 %v633
        %670 = vmatpush1.msra.mxu0 %v632
        %671 = vmatprep.subr.mxu0 %v636
        %672 = vmatpush1.msra.mxu0 %v635
        %673 = vmatprep.subr.mxu0 %v639
        %674 = vmatpush1.msra.mxu0 %v638
        %675 = vmatprep.subr.mxu0 %v642
        %676 = vmatpush1.msra.mxu0 %v641
        %677 = vmatprep.subr.mxu0 %v645
        %678 = vmatpush1.msra.mxu0 %v644
        %679 = vmatprep.subr.mxu0 0.0
        %680 = vmatpush1.msra.mxu0 0.0
        %681 = vmatprep.subr.mxu0 0.0
        %682 = vmatpush1.msra.mxu0 0.0
        %683 = vmatprep.subr.mxu0 0.0
        %684 = vmatpush1.msra.mxu0 0.0
        %685 = vmatprep.subr.mxu0 0.0
        %686 = vmatpush1.msra.mxu0 0.0
        %687 = vmatprep.subr.mxu0 0.0
        %688 = vmatpush1.msra.mxu0 0.0
        %689 = vmatprep.subr.mxu0 0.0
        %690 = vmatpush1.msra.mxu0 0.0
        %691 = vmatprep.subr.mxu0 0.0
        %692 = vmatpush1.msra.mxu0 0.0
        %693 = vmatprep.subr.mxu0 0.0
        %694 = vmatpush1.msra.mxu0 0.0
        %695 = vmatprep.subr.mxu0 0.0
        %696 = vmatpush1.msra.mxu0 0.0
        %697 = vmatprep.subr.mxu0 0.0
        %698 = vmatpush1.msra.mxu0 0.0
        %699 = vmatprep.subr.mxu0 0.0
        %700 = vmatpush1.msra.mxu0 0.0
        %701 = vmatprep.subr.mxu0 0.0
        %702 = vmatpush1.msra.mxu0 0.0
        %703 = vmatprep.subr.mxu0 0.0
        %704 = vmatpush1.msra.mxu0 0.0
        %705 = vmatprep.subr.mxu0 0.0
        %706 = vmatpush1.msra.mxu0 0.0
        %707 = vmatprep.subr.mxu0 0.0
        %708 = vmatpush1.msra.mxu0 0.0
        %709 = vmatprep.subr.mxu0 0.0
        %710 = vmatpush1.msra.mxu0 0.0
        %711 = vmatprep.mubr.f32.mxu0 0.0
        %712 = vmatmul.mubr.f32.gmra.mrb[0].mxu0 %v373
        %v713 = vpop.f32.mrb[0].mxu0
        %v714 = vadd.f32 0.0, %v713
        %v715 = vpop.f32.mrb[0].mxu0
        %v716 = vadd.f32 0.0, %v715
        %717 = vmatprep.mubr.f32.mxu0 0.0
        %718 = vmatmul.mubr.f32.gmra.mrb[0].mxu0 %v374
        %v719 = vpop.f32.mrb[0].mxu0
        %v720 = vadd.f32 0.0, %v719
        %v721 = vpop.f32.mrb[0].mxu0
        %v722 = vadd.f32 0.0, %v721
        %723 = vmatprep.mubr.f32.mxu0 0.0
        %724 = vmatmul.mubr.f32.gmra.mrb[0].mxu0 %v375
        %v725 = vpop.f32.mrb[0].mxu0
        %v726 = vadd.f32 0.0, %v725
        %v727 = vpop.f32.mrb[0].mxu0
        %v728 = vadd.f32 0.0, %v727
        %729 = vmatprep.mubr.f32.mxu0 0.0
        %730 = vmatmul.mubr.f32.gmra.mrb[0].mxu0 %v376
        %v731 = vpop.f32.mrb[0].mxu0
        %v732 = vadd.f32 0.0, %v731
        %v733 = vpop.f32.mrb[0].mxu0
        %v734 = vadd.f32 0.0, %v733
        %735 = vdwg.mxu0
        %736 = vmatprep.subr.mxu0 0.0
        %737 = vmatpush1.msra.mxu0 %v601
        %738 = vmatprep.subr.mxu0 0.0
        %739 = vmatpush1.msra.mxu0 %v604
        %740 = vmatprep.subr.mxu0 0.0
        %741 = vmatpush1.msra.mxu0 %v607
        %742 = vmatprep.subr.mxu0 0.0
        %743 = vmatpush1.msra.mxu0 %v610
        %744 = vmatprep.subr.mxu0 0.0
        %745 = vmatpush1.msra.mxu0 %v613
        %746 = vmatprep.subr.mxu0 0.0
        %747 = vmatpush1.msra.mxu0 %v616
        %748 = vmatprep.subr.mxu0 0.0
        %749 = vmatpush1.msra.mxu0 %v619
        %750 = vmatprep.subr.mxu0 0.0
        %751 = vmatpush1.msra.mxu0 %v622
        %752 = vmatprep.subr.mxu0 0.0
        %753 = vmatpush1.msra.mxu0 %v625
        %754 = vmatprep.subr.mxu0 0.0
        %755 = vmatpush1.msra.mxu0 %v628
        %756 = vmatprep.subr.mxu0 0.0
        %757 = vmatpush1.msra.mxu0 %v631
        %758 = vmatprep.subr.mxu0 0.0
        %759 = vmatpush1.msra.mxu0 %v634
        %760 = vmatprep.subr.mxu0 0.0
        %761 = vmatpush1.msra.mxu0 %v637
        %762 = vmatprep.subr.mxu0 0.0
        %763 = vmatpush1.msra.mxu0 %v640
        %764 = vmatprep.subr.mxu0 0.0
        %765 = vmatpush1.msra.mxu0 %v643
        %766 = vmatprep.subr.mxu0 0.0
        %767 = vmatpush1.msra.mxu0 %v646
        %768 = vmatprep.subr.mxu0 0.0
        %769 = vmatpush1.msra.mxu0 0.0
        %770 = vmatprep.subr.mxu0 0.0
        %771 = vmatpush1.msra.mxu0 0.0
        %772 = vmatprep.subr.mxu0 0.0
        %773 = vmatpush1.msra.mxu0 0.0
        %774 = vmatprep.subr.mxu0 0.0
        %775 = vmatpush1.msra.mxu0 0.0
        %776 = vmatprep.subr.mxu0 0.0
        %777 = vmatpush1.msra.mxu0 0.0
        %778 = vmatprep.subr.mxu0 0.0
        %779 = vmatpush1.msra.mxu0 0.0
        %780 = vmatprep.subr.mxu0 0.0
        %781 = vmatpush1.msra.mxu0 0.0
        %782 = vmatprep.subr.mxu0 0.0
        %783 = vmatpush1.msra.mxu0 0.0
        %784 = vmatprep.subr.mxu0 0.0
        %785 = vmatpush1.msra.mxu0 0.0
        %786 = vmatprep.subr.mxu0 0.0
        %787 = vmatpush1.msra.mxu0 0.0
        %788 = vmatprep.subr.mxu0 0.0
        %789 = vmatpush1.msra.mxu0 0.0
        %790 = vmatprep.subr.mxu0 0.0
        %791 = vmatpush1.msra.mxu0 0.0
        %792 = vmatprep.subr.mxu0 0.0
        %793 = vmatpush1.msra.mxu0 0.0
        %794 = vmatprep.subr.mxu0 0.0
        %795 = vmatpush1.msra.mxu0 0.0
        %796 = vmatprep.subr.mxu0 0.0
        %797 = vmatpush1.msra.mxu0 0.0
        %798 = vmatprep.subr.mxu0 0.0
        %799 = vmatpush1.msra.mxu0 0.0
        %800 = vmatprep.mubr.f32.mxu0 0.0
        %801 = vmatmul.mubr.f32.gmra.mrb[0].mxu0 %v373
        %v802 = vpop.f32.mrb[0].mxu0
        %v803 = vadd.f32 0.0, %v802
        %v804 = vpop.f32.mrb[0].mxu0
        %805 = vmatprep.mubr.f32.mxu0 0.0
        %806 = vmatmul.mubr.f32.gmra.mrb[0].mxu0 %v374
        %v807 = vpop.f32.mrb[0].mxu0
        %v808 = vadd.f32 0.0, %v807
        %v809 = vpop.f32.mrb[0].mxu0
        %810 = vmatprep.mubr.f32.mxu0 0.0
        %811 = vmatmul.mubr.f32.gmra.mrb[0].mxu0 %v375
        %v812 = vpop.f32.mrb[0].mxu0
        %v813 = vadd.f32 0.0, %v812
        %v814 = vpop.f32.mrb[0].mxu0
        %815 = vmatprep.mubr.f32.mxu0 0.0
        %816 = vmatmul.mubr.f32.gmra.mrb[0].mxu0 %v376
        %v817 = vpop.f32.mrb[0].mxu0
        %v818 = vadd.f32 0.0, %v817
        %v819 = vpop.f32.mrb[0].mxu0
        %820 = vdwg.mxu0
        %v821 = vadd.f32 %v492, %v714
        %v822 = vadd.f32 %v494, %v716
        %v823 = vadd.f32 %v498, %v720
        %v824 = vadd.f32 %v500, %v722
        %v825 = vadd.f32 %v504, %v726
        %v826 = vadd.f32 %v506, %v728
        %v827 = vadd.f32 %v510, %v732
        %v828 = vadd.f32 %v512, %v734
        %v829 = vld [vmem:[%s4] sm:$0x3]
        %v831 = vlaneseq
        %v832 = vshrl.u32 %v831, 7
        %v833 = vsub.s32 0, %v832
        %v834 = vrot.slane %v829, %v833
        %v835 = vlaneseq
        %v836 = vshrl.u32 %v835, 7
        %v837 = vsub.s32 1, %v836
        %v838 = vrot.slane %v829, %v837
        %v841 = vadd.f32 %v821, %v834
        %v842 = vadd.f32 %v822, %v838
        %v843 = vadd.f32 %v823, %v834
        %v844 = vadd.f32 %v824, %v838
        %v845 = vadd.f32 %v825, %v834
        %v846 = vadd.f32 %v826, %v838
        %v847 = vadd.f32 %v827, %v834
        %v848 = vadd.f32 %v828, %v838
        %v849 = vxor.u32 %v841, 2147483648
        %v850 = vxor.u32 %v842, 2147483648
        %v851 = vxor.u32 %v843, 2147483648
        %v852 = vxor.u32 %v844, 2147483648
        %v853 = vxor.u32 %v845, 2147483648
        %v854 = vxor.u32 %v846, 2147483648
        %v855 = vxor.u32 %v847, 2147483648
        %v856 = vxor.u32 %v848, 2147483648
        %v857 = vmul.f32 %v849, 1.442695
        %v858 = vpow.pop %v857
        %v859 = vmul.f32 %v850, 1.442695
        %v860 = vpow.pop %v859
        %v861 = vmul.f32 %v851, 1.442695
        %v862 = vpow.pop %v861
        %v863 = vmul.f32 %v852, 1.442695
        %v864 = vpow.pop %v863
        %v865 = vmul.f32 %v853, 1.442695
        %v866 = vpow.pop %v865
        %v867 = vmul.f32 %v854, 1.442695
        %v868 = vpow.pop %v867
        %v869 = vmul.f32 %v855, 1.442695
        %v870 = vpow.pop %v869
        %v871 = vmul.f32 %v856, 1.442695
        %v872 = vpow.pop %v871
        %v873 = vadd.f32 %v858, 1.0
        %v874 = vadd.f32 %v860, 1.0
        %v875 = vadd.f32 %v862, 1.0
        %v876 = vadd.f32 %v864, 1.0
        %v877 = vadd.f32 %v866, 1.0
        %v878 = vadd.f32 %v868, 1.0
        %v879 = vadd.f32 %v870, 1.0
        %v880 = vadd.f32 %v872, 1.0
        %v881 = vrcp.pop %v873
        %v882 = vmul.f32 1.0, %v881
        %v883 = vrcp.pop %v874
        %v884 = vmul.f32 1.0, %v883
        %v885 = vrcp.pop %v875
        %v886 = vmul.f32 1.0, %v885
        %v887 = vrcp.pop %v876
        %v888 = vmul.f32 1.0, %v887
        %v889 = vrcp.pop %v877
        %v890 = vmul.f32 1.0, %v889
        %v891 = vrcp.pop %v878
        %v892 = vmul.f32 1.0, %v891
        %v893 = vrcp.pop %v879
        %v894 = vmul.f32 1.0, %v893
        %v895 = vrcp.pop %v880
        %v896 = vmul.f32 1.0, %v895
        %v897 = vld [vmem:[%s5] sm:$0x1]
        %v899 = vlaneseq
        %v900 = vshrl.u32 %v899, 7
        %v901 = vsub.s32 0, %v900
        %v902 = vrot.slane %v897, %v901
        %v904 = vadd.f32 %v581, %v902
        %v905 = vadd.f32 %v586, %v902
        %v906 = vadd.f32 %v591, %v902
        %v907 = vadd.f32 %v596, %v902
        %v908 = vld [vmem:[%s6] sm:$0x1]
        %v910 = vlaneseq
        %v911 = vshrl.u32 %v910, 7
        %v912 = vsub.s32 0, %v911
        %v913 = vrot.slane %v908, %v912
        %v915 = vadd.f32 %v803, %v913
        %v916 = vadd.f32 %v808, %v913
        %v917 = vadd.f32 %v813, %v913
        %v918 = vadd.f32 %v818, %v913
        %v919 = vmul.f32 %v882, %v915
        %v920 = vmul.f32 %v886, %v916
        %v921 = vmul.f32 %v890, %v917
        %v922 = vmul.f32 %v894, %v918
        %v923 = vadd.f32 %v904, %v919
        %v924 = vadd.f32 %v905, %v920
        %v925 = vadd.f32 %v906, %v921
        %v926 = vadd.f32 %v907, %v922
        %v927 = vtanh.pop %v923
        %v928 = vtanh.pop %v924
        %v929 = vtanh.pop %v925
        %v930 = vtanh.pop %v926
        %v931 = vsub.f32 %v373, %v927
        %v932 = vsub.f32 %v374, %v928
        %v933 = vsub.f32 %v375, %v929
        %v934 = vsub.f32 %v376, %v930
        %v935 = vmul.f32 %v884, %v931
        %v936 = vmul.f32 %v888, %v932
        %v937 = vmul.f32 %v892, %v933
        %v938 = vmul.f32 %v896, %v934
        %v939 = vadd.f32 %v927, %v935
        %v940 = vadd.f32 %v928, %v936
        %v941 = vadd.f32 %v929, %v937
        %v942 = vadd.f32 %v930, %v938
        %943 = vst [vmem:[%s365] sm:$0xff] %v939
        %944 = vst [vmem:[%s365 + $0x8] sm:$0xff] %v940
        %945 = vst [vmem:[%s365 + $0x10] sm:$0xff] %v941
        %946 = vst [vmem:[%s365 + $0x18] sm:$0xff] %v942
        %s947 = sand.u32 %s193, 1
        %s948 = scalar_lea.sflag [#allocation4], %s947
        %s949 = sand.u32 %s193, 1
        %s950 = smul.addr %s949, 32
        %s951 = scalar_lea.vmem [#allocation10], %s950
        // Predicated region
        $region65: #{gru_update.1} parent=47 // pred_check
          %p952 = pneg %p203
        $region66: #{gru_update.1} parent=47 // pred_check_branch
          %954 = sbr.rel (%p952) target = $region68
        $region67: #{gru_update.1} parent=47 // pred_region
          %s955 = smul.u32 4, %s28
          %s957 = ssub.s32 512, 512
          %958 = vsyncadd %s948, %s957
          %s959 = smul.addr %s955, 128
          %s960 = scalar_lea.hbm %s7, %s959
          %s961 = sshll.u32 %s951, 4
          %s962 = int_to_ptr.vmem [resolvable:$true] %s961
          %967 = dma.vmem_to_hbm [thread:$0]  %s962, 512, %s960, %s948, 128, 128, 8
        $region68: #{gru_update.1} parent=47 // pred_fallthru
          _
      $region48: #{gru_update.1} parent=5 // pred_fallthru
        _
      %p968 = scmp.le.s32.totalorder 2, %s23
      // Predicated region
      $region69: #{gru_update.1} parent=5 // pred_check
        %p969 = pneg %p968
      $region70: #{gru_update.1} parent=5 // pred_check_branch
        %971 = sbr.rel (%p969) target = $region72
      $region71: #{gru_update.1} parent=5 // pred_region
        %s972 = ssub.s32 %s23, 2
        // Predicated region
        $region73: #{gru_update.1} parent=71 // pred_check
          %p973 = pneg %p209
        $region74: #{gru_update.1} parent=71 // pred_check_branch
          %975 = sbr.rel (%p973) target = $region76
        $region75: #{gru_update.1} parent=71 // pred_region
          %s976 = sand.u32 %s194, 1
          %s977 = scalar_lea.sflag [#allocation4], %s976
          %s978 = sand.u32 %s194, 1
          %s979 = smul.addr %s978, 32
          %s980 = scalar_lea.vmem [#allocation10], %s979
          %981 = dma.done %s977, 512
        $region76: #{gru_update.1} parent=71 // pred_fallthru
          _
      $region72: #{gru_update.1} parent=5 // pred_fallthru
        _
    $region6: #{gru_update.1} parent=1 // loop_footer
      %s27 = sadd.s32 1, %s23
    $region7: #{gru_update.1} parent=1 // loop_footer_branch
      %22 = sbr.rel target = $region3
    $region8: #{gru_update.1} parent=1 // loop_exit
      _
    %982 = vsyncpa [#allocation3], 1
    %s983 = scalar_lea.sflag [#allocation3], 1
    %984 = vsyncpa %s983, 1
    %985 = vsyncpa [#allocation6], 1
    %s986 = scalar_lea.sflag [#allocation6], 1
    %987 = vsyncpa %s986, 1
    %988 = vsyncpa [#allocation9], 1
    %989 = vsyncpa [#allocation4], 1
    %s990 = scalar_lea.sflag [#allocation4], 1
    %991 = vsyncpa %s990, 1

</llo_original>
